<compile_context>
chip_gen: v5e
topology: v5e:2x2
jax: 0.10.0
libtpu: 0.0.40
codegen_flags: <defaults>
</compile_context>

<pallas_src>
import math

import jax
import jax.numpy as jnp
from jax.experimental import pallas as pl
from jax.experimental.pallas import tpu as pltpu

_LANE = 128
_SUBLANE = 8
# ~2 MiB per x block -> (x + out) double-buffered + pe row ~= 8-9 MiB buffered,
# comfortably inside v5e's 16 MiB scoped-VMEM default (and v7x's 32 MiB).
_TARGET_BLOCK_BYTES = 2 * 1024 * 1024


def build_positional_encoding(d_model: int, max_len: int = 20) -> jnp.ndarray:
    """Sinusoidal PE table, matching the PyTorch module's init (incl. odd d_model)."""
    position = jnp.arange(0, max_len, dtype=jnp.float32)[:, None]          # (max_len, 1)
    div_term = jnp.exp(
        jnp.arange(0, d_model, 2, dtype=jnp.float32) * (-math.log(10000.0) / d_model)
    )                                                                       # (ceil(d/2),)
    pe = jnp.zeros((max_len, d_model), dtype=jnp.float32)
    if d_model % 2 == 0:
        pe = pe.at[:, 0::2].set(jnp.sin(position * div_term))
        pe = pe.at[:, 1::2].set(jnp.cos(position * div_term))
    else:
        # odd d_model branch from the PyTorch module
        pe = pe.at[:, 0::2].set(jnp.sin(position * div_term))
        pe = pe.at[:, 1::2].set(jnp.cos(position * div_term[:-1]))
    return pe  # (max_len, d_model)


def _round_down(v: int, m: int) -> int:
    return (v // m) * m


def _choose_tiles(rows: int, cols: int, itemsize: int):
    """Pick (row_tile, col_tile) for the flattened (rows, cols) broadcast-add."""
    target_elems = max(1, _TARGET_BLOCK_BYTES // itemsize)
    # Lane (last) dim: as wide as possible, multiple of 128 when cols allows it;
    # otherwise full extent (always legal under the (8,128) rule).
    if cols % _LANE == 0:
        col_tile = min(cols, max(_LANE, _round_down(target_elems // _SUBLANE, _LANE)))
    else:
        col_tile = cols
    # Sublane (row) dim: fill the remaining per-block budget; multiple of 8 or
    # full extent.
    row_budget = max(1, target_elems // col_tile)
    if rows <= row_budget or rows < _SUBLANE:
        row_tile = rows
    else:
        row_tile = max(_SUBLANE, _round_down(row_budget, _SUBLANE))
    return row_tile, col_tile


def _pe_add_kernel(x_ref, pe_ref, o_ref):
    # x_ref / o_ref: (row_tile, col_tile); pe_ref: (1, col_tile) -> row broadcast.
    o_ref[...] = x_ref[...] + pe_ref[...]


def positional_encoding_forward(x: jnp.ndarray, pe: jnp.ndarray) -> jnp.ndarray:
    """x: (B, S, D); pe: (max_len, D). Returns x + pe[None, :S, :]."""
    B, S, D = x.shape
    rows, cols = B, S * D

    # Wrapper-side layout plumbing only (no compute): lane-dense 2D views.
    x2 = x.reshape(rows, cols)
    pe_row = pe[:S, :].astype(x.dtype).reshape(1, cols)

    itemsize = jnp.dtype(x.dtype).itemsize
    row_tile, col_tile = _choose_tiles(rows, cols, itemsize)
    grid = (pl.cdiv(rows, row_tile), pl.cdiv(cols, col_tile))

    # NOTE: for tiny inputs (like the demo shape) a plain XLA `x + pe[None, :S]`
    # would fuse with neighbors and be faster; the Pallas path pays off at large S*D.
    out2 = pl.pallas_call(
        _pe_add_kernel,
        out_shape=jax.ShapeDtypeStruct((rows, cols), x.dtype),
        grid_spec=pltpu.PrefetchScalarGridSpec(
            num_scalar_prefetch=0,
            grid=grid,
            in_specs=[
                pl.BlockSpec((row_tile, col_tile), lambda i, j: (i, j)),
                pl.BlockSpec((1, col_tile), lambda i, j: (0, j)),
            ],
            out_specs=pl.BlockSpec((row_tile, col_tile), lambda i, j: (i, j)),
        ),
        compiler_params=pltpu.CompilerParams(
            dimension_semantics=("parallel", "parallel"),
        ),
        cost_estimate=pl.CostEstimate(
            flops=rows * cols,
            transcendentals=0,
            bytes_accessed=(2 * rows * cols + cols) * itemsize,
        ),
    )(x2, pe_row)

    return out2.reshape(B, S, D)


if __name__ == "__main__":
    batch, seq_len, d_model, max_len = 2, 8, 32, 20

    key = jax.random.PRNGKey(0)
    x = jax.random.normal(key, (batch, seq_len, d_model), dtype=jnp.float32)

    pe = build_positional_encoding(d_model, max_len)

    out = positional_encoding_forward(x, pe)
    out = jax.block_until_ready(out)

    # sanity check against pure-JAX reference
    ref = x + pe[None, :seq_len, :]
    assert out.shape == (batch, seq_len, d_model)
    assert jnp.allclose(out, ref, atol=1e-6), "mismatch vs reference"

    print("KERNEL_OK")
</pallas_src>

<mosaic_0001>
module attributes {stable_mosaic.version = 11 : i64} {
  func.func @_pe_add_kernel(%arg0: i32, %arg1: i32, %arg2: memref<2x256xf32, #tpu.memory_space<vmem>>, %arg3: memref<1x256xf32, #tpu.memory_space<vmem>>, %arg4: memref<2x256xf32, #tpu.memory_space<vmem>>) attributes {dimension_semantics = [#tpu.dimension_semantics<parallel>, #tpu.dimension_semantics<parallel>], iteration_bounds = array<i64: 1, 1>, scalar_prefetch = 0 : i64, scratch_operands = 0 : i64, tpu.core_type = #tpu.core_type<tc>, window_params = [{transform_indices = @transform_0, window_bounds = array<i64: 2, 256>}, {transform_indices = @transform_1, window_bounds = array<i64: 1, 256>}, {transform_indices = @transform_2, window_bounds = array<i64: 2, 256>}]} {
    %c0 = arith.constant 0 : index
    %c0_0 = arith.constant 0 : index
    %0 = vector.load %arg2[%c0, %c0_0] : memref<2x256xf32, #tpu.memory_space<vmem>>, vector<2x256xf32>
    %c0_1 = arith.constant 0 : index
    %c0_2 = arith.constant 0 : index
    %1 = vector.load %arg3[%c0_1, %c0_2] : memref<1x256xf32, #tpu.memory_space<vmem>>, vector<1x256xf32>
    %2 = vector.broadcast %1 : vector<1x256xf32> to vector<2x256xf32>
    %3 = arith.addf %0, %2 : vector<2x256xf32>
    %c0_3 = arith.constant 0 : index
    %c0_4 = arith.constant 0 : index
    %4 = vector.load %arg4[%c0_3, %c0_4] : memref<2x256xf32, #tpu.memory_space<vmem>>, vector<2x256xf32>
    tpu.vector_store %arg4[%c0_3, %c0_4], %3 {strides = array<i32>} : memref<2x256xf32, #tpu.memory_space<vmem>>, vector<2x256xf32>,
    return
  }
  func.func @transform_0(%arg0: i32, %arg1: i32) -> (i32, i32) {
    %c0_i32 = arith.constant 0 : i32
    return %arg0, %arg1 : i32, i32
  }
  func.func @transform_1(%arg0: i32, %arg1: i32) -> (i32, i32) {
    %c0_i32 = arith.constant 0 : i32
    %c0_i32_0 = arith.constant 0 : i32
    return %c0_i32, %arg1 : i32, i32
  }
  func.func @transform_2(%arg0: i32, %arg1: i32) -> (i32, i32) {
    %c0_i32 = arith.constant 0 : i32
    return %arg0, %arg1 : i32, i32
  }
}

</mosaic_0001>

<llo_original>
// kernel: tpu_custom_call.1
$region0: #{tpu_custom_call.1}
  #allocation0 [shape = 'u32[]', space=smem, size = 0x4, offset = 0x4, fixed_abs, tag = 'smem constant byte address 0x4 - core index']
  #allocation1 [shape = 'u32[72,128]{1,0:T(1,128)}', space=vmem, size = 0x9000, scoped, tag = 'internal scratch']
  %s0 = inlined_call_operand.hbm [shape: f32[2,256], index: 0, kind: input, shape index: {}]
  %s1 = inlined_call_operand.hbm [shape: f32[1,256], index: 1, kind: input, shape index: {}]
  %s2 = inlined_call_operand.hbm [shape: f32[2,256], index: 2, kind: output, shape index: {}]
  %s3 = sld [smem:[#allocation0]]
  $region26: #{tpu_custom_call.1} parent=0
    _
  %s5 = ssub.s32 1, %s3
  %s6 = scalar_select 0, %s5, %s3
  $region1: #{tpu_custom_call.1} parent=0
    #allocation2 [shape = 'u8[2048]{0}', space=vmem, size = 0x800, scoped, tag = 'input window, operand 0, single buffered']
    #allocation3 [shape = 's32[1]{0}', space=sflag, size = 0x4, scoped, tag = 'scoped memory for tpu_custom_call.1']
    #allocation4 [shape = 's32[1]{0}', space=sflag, size = 0x4, scoped, tag = 'scoped memory for tpu_custom_call.1']
    #allocation5 [shape = 'u8[1024]{0}', space=vmem, size = 0x400, scoped, tag = 'input window, operand 1, single buffered']
    #allocation6 [shape = 's32[1]{0}', space=sflag, size = 0x4, scoped, tag = 'scoped memory for tpu_custom_call.1']
    #allocation7 [shape = 'u8[2048]{0}', space=vmem, size = 0x800, scoped, tag = 'output window, operand 0, single buffered']
    %7 = vsyncpa [#allocation3], 0
    %8 = vsyncpa [#allocation6], 0
    %9 = vsyncpa [#allocation4], 0
    // Predicated region
    $region2: #{tpu_custom_call.1} parent=1 // pred_check
      _
    $region3: #{tpu_custom_call.1} parent=1 // pred_check_branch
      %11 = sbr.rel (0) target = $region5
    $region4: #{tpu_custom_call.1} parent=1 // pred_region
      %13 = vsyncadd [#allocation3], 0
      %s15 = sshll.u32 %s0, 4
      %s16 = int_to_ptr.hbm [resolvable:$true] %s15
      %s17 = sshll.u32 [#allocation2], 4
      %s18 = int_to_ptr.vmem [resolvable:$true] %s17
      %20 = dma.hbm_to_vmem [thread:$0]  %s16, 64, %s18, [#allocation3]
    $region5: #{tpu_custom_call.1} parent=1 // pred_fallthru
      _
    // Predicated region
    $region6: #{tpu_custom_call.1} parent=1 // pred_check
      _
    $region7: #{tpu_custom_call.1} parent=1 // pred_check_branch
      %22 = sbr.rel (0) target = $region9
    $region8: #{tpu_custom_call.1} parent=1 // pred_region
      %24 = vsyncadd [#allocation6], 0
      %s26 = sshll.u32 %s1, 4
      %s27 = int_to_ptr.hbm [resolvable:$true] %s26
      %s28 = sshll.u32 [#allocation5], 4
      %s29 = int_to_ptr.vmem [resolvable:$true] %s28
      %31 = dma.hbm_to_vmem [thread:$0]  %s27, 32, %s29, [#allocation6]
    $region9: #{tpu_custom_call.1} parent=1 // pred_fallthru
      _
    // Predicated region
    $region10: #{tpu_custom_call.1} parent=1 // pred_check
      _
    $region11: #{tpu_custom_call.1} parent=1 // pred_check_branch
      %33 = sbr.rel (0) target = $region13
    $region12: #{tpu_custom_call.1} parent=1 // pred_region
      %35 = dma.done [#allocation3], 64
    $region13: #{tpu_custom_call.1} parent=1 // pred_fallthru
      _
    // Predicated region
    $region14: #{tpu_custom_call.1} parent=1 // pred_check
      _
    $region15: #{tpu_custom_call.1} parent=1 // pred_check_branch
      %37 = sbr.rel (0) target = $region17
    $region16: #{tpu_custom_call.1} parent=1 // pred_region
      %39 = dma.done [#allocation6], 32
    $region17: #{tpu_custom_call.1} parent=1 // pred_fallthru
      _
    %v40 = vld [vmem:[#allocation2] sm:$0xf]
    %v41 = vld [vmem:[#allocation5] sm:$0x3]
    %v43 = vperm.slane %v41, 0
    %v44 = vperm.slane %v41, 1
    %v45 = vrot.slane %v44, 6
    %vm46 = vcmask 1041408
    %v47 = vsel %vm46, %v43, %v45
    %v49 = vadd.f32 %v40, %v47
    %50 = vst [vmem:[#allocation7] sm:$0xf] %v49
    // Predicated region
    $region18: #{tpu_custom_call.1} parent=1 // pred_check
      _
    $region19: #{tpu_custom_call.1} parent=1 // pred_check_branch
      %52 = sbr.rel (0) target = $region21
    $region20: #{tpu_custom_call.1} parent=1 // pred_region
      %54 = vsyncadd [#allocation4], 0
      %s56 = sshll.u32 [#allocation7], 4
      %s57 = int_to_ptr.vmem [resolvable:$true] %s56
      %s58 = sshll.u32 %s2, 4
      %s59 = int_to_ptr.hbm [resolvable:$true] %s58
      %61 = dma.vmem_to_hbm [thread:$0]  %s57, 64, %s59, [#allocation4]
    $region21: #{tpu_custom_call.1} parent=1 // pred_fallthru
      _
    // Predicated region
    $region22: #{tpu_custom_call.1} parent=1 // pred_check
      _
    $region23: #{tpu_custom_call.1} parent=1 // pred_check_branch
      %63 = sbr.rel (0) target = $region25
    $region24: #{tpu_custom_call.1} parent=1 // pred_region
      %65 = dma.done [#allocation4], 64
    $region25: #{tpu_custom_call.1} parent=1 // pred_fallthru
      _
    %66 = vsyncpa [#allocation3], 1
    %67 = vsyncpa [#allocation6], 1
    %68 = vsyncpa [#allocation4], 1

</llo_original>
